<compile_context>
chip_gen: v7x
topology: tpu7x:2x2x1
jax: 0.10.0
libtpu: 0.0.40
codegen_flags: <defaults>
</compile_context>

<pallas_src>
import functools

import jax
import jax.numpy as jnp
from jax.experimental import pallas as pl
from jax.experimental.pallas import tpu as pltpu


def _round_down(x, m):
    return (x // m) * m


def _sse_kernel(x_ref, t_ref, o_ref, acc_ref, *, m_total, tile_m,
                blocks_per_split, needs_mask, diff_dtype):
    s = pl.program_id(0)
    b = pl.program_id(1)

    @pl.when(b == 0)
    def _():
        acc_ref[...] = jnp.zeros_like(acc_ref)

    # Subtract in the promoted operand dtype (bf16 on v6e/v7x when both sides
    # are bf16); square + accumulate in f32.
    diff = x_ref[...].astype(diff_dtype) - t_ref[...].astype(diff_dtype)
    sq = diff.astype(jnp.float32)
    sq = sq * sq

    if needs_mask:
        # Zero rows past the end of the (ragged) data.  Only emitted when the
        # last block is partial / duplicated, so the common path pays nothing.
        row0 = (s * blocks_per_split + b) * tile_m
        rows = jax.lax.broadcasted_iota(jnp.int32, (tile_m, 1), 0) + row0
        sq = jnp.where(rows < m_total, sq, 0.0)

    # Sublane-group partial reduction: (tile_m, D) -> (tile_m//8, 8, D), sum
    # over axis 0 is pure vreg-wise VPU adds (no XLU) into a 1-sublane-tile
    # accumulator.  The single cross-sublane/lane reduction happens in JAX.
    d = sq.shape[-1]
    acc_ref[...] += jnp.sum(sq.reshape(tile_m // 8, 8, d), axis=0)

    @pl.when(b == pl.num_programs(1) - 1)
    def _():
        o_ref[...] = acc_ref[...]


def _sse_pallas(x_sel, target, *, num_splits):
    m, d = x_sel.shape

    # Biggest row-tile (multiple of 8) such that 2 operands x 2 pipeline
    # buffers stay within ~20 MiB: safe inside v7x's 64 MiB physical VMEM,
    # generous headroom on v5e/v6e's 128 MiB.
    input_budget = 20 * 1024 * 1024
    per_row = 2 * d * (x_sel.dtype.itemsize + target.dtype.itemsize)
    tile_m = _round_down(max(input_budget // per_row, 8), 8)
    tile_m = max(8, min(tile_m, 8192, _round_down(m, 8)))

    total_blocks = pl.cdiv(m, tile_m)
    num_splits = max(1, min(num_splits, total_blocks))
    blocks_per_split = pl.cdiv(total_blocks, num_splits)
    needs_mask = (m % tile_m != 0) or (num_splits * blocks_per_split != total_blocks)

    diff_dtype = jnp.promote_types(x_sel.dtype, target.dtype)

    kernel = functools.partial(
        _sse_kernel, m_total=m, tile_m=tile_m,
        blocks_per_split=blocks_per_split, needs_mask=needs_mask,
        diff_dtype=diff_dtype)

    def row_map(s, b):
        blk = s * blocks_per_split + b
        # Clamp blocks past the data (possible when num_splits does not divide
        # total_blocks); their contribution is masked to zero in the kernel.
        return (jnp.minimum(blk, total_blocks - 1), 0)

    partials = pl.pallas_call(
        kernel,
        out_shape=jax.ShapeDtypeStruct((num_splits * 8, d), jnp.float32),
        grid_spec=pltpu.PrefetchScalarGridSpec(
            num_scalar_prefetch=0,
            grid=(num_splits, blocks_per_split),
            in_specs=[
                pl.BlockSpec((tile_m, d), row_map),
                pl.BlockSpec((tile_m, d), row_map),
            ],
            out_specs=pl.BlockSpec((8, d), lambda s, b: (s, 0)),
            scratch_shapes=[pltpu.VMEM((8, d), jnp.float32)],
        ),
        compiler_params=pltpu.CompilerParams(
            dimension_semantics=("parallel", "arbitrary"),
            vmem_limit_bytes=32 * 1024 * 1024,
        ),
    )(x_sel, target)
    return jnp.sum(partials, dtype=jnp.float32)


@functools.partial(jax.jit, static_argnames=("num_splits", "pallas_min_elems"))
def mot_l2_loss(inputs, target, valid_pos, *, num_splits=1, pallas_min_elems=65536):
    """JAX/Pallas equivalent of MotL2Loss.forward.

    inputs:    (N, ...) float array.
    target:    (M, ...) array (or list/tuple, concatenated along axis 0);
               M == number of True entries in valid_pos, rows ordered like the
               True positions (torch boolean-indexing order).
    valid_pos: (N,) bool array.
    """
    if isinstance(target, (list, tuple)):
        target = jnp.concatenate(target, axis=0)

    n = inputs.shape[0]
    x2 = inputs.reshape(n, -1)
    m = target.shape[0]
    t2 = target.reshape(m, -1)
    d = x2.shape[1]
    assert t2.shape[1] == d, (t2.shape, x2.shape)

    out_dtype = jnp.promote_types(inputs.dtype, target.dtype)

    if m == 0:
        # nn.MSELoss over an empty selection is NaN.
        return jnp.array(jnp.nan, dtype=out_dtype)

    # Row gather of the valid inputs (M is static from target's shape, so this
    # is a single fused XLA gather).  Target rows must be ordered like the
    # True positions of valid_pos, matching torch boolean indexing.
    idx = jnp.nonzero(valid_pos.astype(bool), size=m, fill_value=0)[0]
    x_sel = jnp.take(x2, idx, axis=0)

    if m < 8 or m * d < pallas_min_elems:
        # Small problems: kernel launch + pipeline prologue would dominate.
        diff = (x_sel.astype(out_dtype) - t2.astype(out_dtype)).astype(jnp.float32)
        sse = jnp.sum(diff * diff)
    else:
        sse = _sse_pallas(x_sel, t2, num_splits=num_splits)

    # MSELoss divides by the number of selected elements (= M * D, static).
    return (sse / jnp.float32(m * d)).astype(out_dtype)


if __name__ == "__main__":
    key = jax.random.PRNGKey(0)
    k1, k2, k3 = jax.random.split(key, 3)

    # --- Pallas path (small, but large enough to exercise the kernel) ------
    N, D = 256, 128
    inputs = jax.random.normal(k1, (N, D), dtype=jnp.float32)
    valid_pos = jax.random.uniform(k2, (N,)) > 0.5
    num_valid = int(jnp.sum(valid_pos))

    # `target` may come as a list in the PyTorch module -> emulate with two
    # chunks (the torch.cat(target, 0) path is handled inside mot_l2_loss).
    tgt_full = jax.random.normal(k3, (num_valid, D), dtype=jnp.float32)
    split = num_valid // 2
    target_list = [tgt_full[:split], tgt_full[split:]]

    loss = mot_l2_loss(inputs, target_list, valid_pos, pallas_min_elems=0)
    loss = jax.block_until_ready(loss)

    idx = jnp.nonzero(valid_pos, size=num_valid)[0]
    ref = jnp.mean((inputs[idx] - tgt_full) ** 2)
    assert jnp.allclose(loss, ref, rtol=1e-5, atol=1e-6), (loss, ref)

    # --- Tiny problem exercises the pure-JAX fallback path ------------------
    n2, d2 = 8, 32
    x_small = jax.random.normal(k2, (n2, d2), dtype=jnp.float32)
    vp_small = jnp.array([True, False, True, True, False, False, True, False])
    m_small = int(jnp.sum(vp_small))
    t_small = jax.random.normal(k3, (m_small, d2), dtype=jnp.float32)
    loss_small = jax.block_until_ready(mot_l2_loss(x_small, t_small, vp_small))
    idx_small = jnp.nonzero(vp_small, size=m_small)[0]
    ref_small = jnp.mean((x_small[idx_small] - t_small) ** 2)
    assert jnp.allclose(loss_small, ref_small, rtol=1e-5, atol=1e-6), (loss_small, ref_small)

    print("KERNEL_OK")
</pallas_src>

<mosaic_0001>
module attributes {stable_mosaic.version = 11 : i64} {
  func.func private @main(%arg0: i32) attributes {dimension_semantics = [#tpu.dimension_semantics<core_parallel>], iteration_bounds = array<i64: 2>, tpu.core_type = #tpu.core_type<sc_scalar_subcore>, window_params = []} {
    return
  }
}

module attributes {stable_mosaic.version = 11 : i64} {
  func.func private @main(%arg0: i32) attributes {dimension_semantics = [#tpu.dimension_semantics<core_parallel>], iteration_bounds = array<i64: 2>, tpu.core_type = #tpu.core_type<sc_scalar_subcore>, window_params = []} {
    return
  }
}

module attributes {stable_mosaic.version = 11 : i64} {
  func.func @_sse_kernel(%arg0: i32, %arg1: i32, %arg2: memref<120x128xf32, #tpu.memory_space<vmem>>, %arg3: memref<120x128xf32, #tpu.memory_space<vmem>>, %arg4: memref<8x128xf32, #tpu.memory_space<vmem>>, %arg5: memref<8x128xf32, #tpu.memory_space<vmem>>) attributes {dimension_semantics = [#tpu.dimension_semantics<parallel>, #tpu.dimension_semantics<arbitrary>], iteration_bounds = array<i64: 1, 2>, scalar_prefetch = 0 : i64, scratch_operands = 1 : i64, tpu.core_type = #tpu.core_type<tc>, window_params = [{transform_indices = @transform_0, window_bounds = array<i64: 120, 128>}, {transform_indices = @transform_1, window_bounds = array<i64: 120, 128>}, {transform_indices = @transform_2, window_bounds = array<i64: 8, 128>}]} {
    %c0_i32 = arith.constant 0 : i32
    %0 = arith.cmpi eq, %arg1, %c0_i32 : i32
    %1 = arith.extui %0 : i1 to i32
    %c0_i32_0 = arith.constant 0 : i32
    %2 = arith.cmpi ne, %1, %c0_i32_0 : i32
    scf.if %2 {
      %cst_10 = arith.constant 0.000000e+00 : f32
      %27 = vector.broadcast %cst_10 : f32 to vector<8x128xf32>
      %c0_11 = arith.constant 0 : index
      %c0_12 = arith.constant 0 : index
      %28 = vector.load %arg5[%c0_11, %c0_12] : memref<8x128xf32, #tpu.memory_space<vmem>>, vector<8x128xf32>
      tpu.vector_store %arg5[%c0_11, %c0_12], %27 {strides = array<i32>} : memref<8x128xf32, #tpu.memory_space<vmem>>, vector<8x128xf32>,
    } else {
    }
    %c0 = arith.constant 0 : index
    %c0_1 = arith.constant 0 : index
    %3 = vector.load %arg2[%c0, %c0_1] : memref<120x128xf32, #tpu.memory_space<vmem>>, vector<120x128xf32>
    %c0_2 = arith.constant 0 : index
    %c0_3 = arith.constant 0 : index
    %4 = vector.load %arg3[%c0_2, %c0_3] : memref<120x128xf32, #tpu.memory_space<vmem>>, vector<120x128xf32>
    %5 = arith.subf %3, %4 : vector<120x128xf32>
    %6 = arith.mulf %5, %5 : vector<120x128xf32>
    %c2_i32 = arith.constant 2 : i32
    %7 = arith.muli %arg0, %c2_i32 : i32
    %8 = arith.addi %7, %arg1 : i32
    %c120_i32 = arith.constant 120 : i32
    %9 = arith.muli %8, %c120_i32 : i32
    %10 = tpu.iota {dimensions = array<i32: 0>} : vector<120x1xi32>
    %11 = vector.broadcast %9 : i32 to vector<120x1xi32>
    %12 = arith.addi %10, %11 : vector<120x1xi32>
    %c121_i32 = arith.constant 121 : i32
    %13 = vector.broadcast %c121_i32 : i32 to vector<120x1xi32>
    %14 = arith.cmpi slt, %12, %13 : vector<120x1xi32>
    %cst = arith.constant 0.000000e+00 : f32
    %15 = vector.shape_cast %14 : vector<120x1xi1> to vector<120x1xi1>
    %16 = vector.broadcast %15 : vector<120x1xi1> to vector<120x128xi1>
    %17 = vector.broadcast %cst : f32 to vector<120x128xf32>
    %18 = arith.select %16, %6, %17 : vector<120x128xi1>, vector<120x128xf32>
    %c0_4 = arith.constant 0 : index
    %c0_5 = arith.constant 0 : index
    %19 = vector.load %arg5[%c0_4, %c0_5] : memref<8x128xf32, #tpu.memory_space<vmem>>, vector<8x128xf32>
    %20 = vector.shape_cast %18 : vector<120x128xf32> to vector<15x8x128xf32>
    %cst_6 = arith.constant dense<0.000000e+00> : vector<8x128xf32>
    %21 = vector.multi_reduction <add>, %20, %cst_6 [0] : vector<15x8x128xf32> to vector<8x128xf32>
    %22 = arith.addf %19, %21 : vector<8x128xf32>
    %c0_7 = arith.constant 0 : index
    %c0_8 = arith.constant 0 : index
    %23 = vector.load %arg5[%c0_7, %c0_8] : memref<8x128xf32, #tpu.memory_space<vmem>>, vector<8x128xf32>
    tpu.vector_store %arg5[%c0_7, %c0_8], %22 {strides = array<i32>} : memref<8x128xf32, #tpu.memory_space<vmem>>, vector<8x128xf32>,
    %c1_i32 = arith.constant 1 : i32
    %24 = arith.cmpi eq, %arg1, %c1_i32 : i32
    %25 = arith.extui %24 : i1 to i32
    %c0_i32_9 = arith.constant 0 : i32
    %26 = arith.cmpi ne, %25, %c0_i32_9 : i32
    scf.if %26 {
      %c0_10 = arith.constant 0 : index
      %c0_11 = arith.constant 0 : index
      %27 = vector.load %arg5[%c0_10, %c0_11] : memref<8x128xf32, #tpu.memory_space<vmem>>, vector<8x128xf32>
      %c0_12 = arith.constant 0 : index
      %c0_13 = arith.constant 0 : index
      %28 = vector.load %arg4[%c0_12, %c0_13] : memref<8x128xf32, #tpu.memory_space<vmem>>, vector<8x128xf32>
      tpu.vector_store %arg4[%c0_12, %c0_13], %27 {strides = array<i32>} : memref<8x128xf32, #tpu.memory_space<vmem>>, vector<8x128xf32>,
    } else {
    }
    return
  }
  func.func @transform_0(%arg0: i32, %arg1: i32) -> (i32, i32) {
    %c2_i32 = arith.constant 2 : i32
    %0 = arith.muli %arg0, %c2_i32 : i32
    %1 = arith.addi %0, %arg1 : i32
    %c1_i32 = arith.constant 1 : i32
    %2 = arith.minsi %1, %c1_i32 : i32
    %c0_i32 = arith.constant 0 : i32
    %c0_i32_0 = arith.constant 0 : i32
    return %2, %c0_i32 : i32, i32
  }
  func.func @transform_1(%arg0: i32, %arg1: i32) -> (i32, i32) {
    %c2_i32 = arith.constant 2 : i32
    %0 = arith.muli %arg0, %c2_i32 : i32
    %1 = arith.addi %0, %arg1 : i32
    %c1_i32 = arith.constant 1 : i32
    %2 = arith.minsi %1, %c1_i32 : i32
    %c0_i32 = arith.constant 0 : i32
    %c0_i32_0 = arith.constant 0 : i32
    return %2, %c0_i32 : i32, i32
  }
  func.func @transform_2(%arg0: i32, %arg1: i32) -> (i32, i32) {
    %c0_i32 = arith.constant 0 : i32
    %c0_i32_0 = arith.constant 0 : i32
    return %arg0, %c0_i32 : i32, i32
  }
}

</mosaic_0001>

<llo_original>
// kernel: mot_l2_loss.1
$region0: #{mot_l2_loss.1}
  #allocation0 [shape = 'u32[]', space=smem, size = 0x4, offset = 0x4, fixed_abs, tag = 'smem constant byte address 0x4 - core index']
  #allocation1 [shape = 'u32[144,128]{1,0:T(1,128)}', space=vmem, size = 0x12000, scoped, tag = 'internal scratch']
  #allocation2 [shape = 'f32[8,128]{1,0:T(8,128)}', space=vmem, size = 0x1000, scoped, tag = 'scratch operand']
  %s0 = inlined_call_operand.vmem [shape: f32[121,128], index: 0, kind: input, shape index: {}]
  %s1 = inlined_call_operand.vmem [shape: f32[121,128], index: 1, kind: input, shape index: {}]
  %s2 = inlined_call_operand.vmem [shape: f32[8,128], index: 2, kind: output, shape index: {}]
  %s3 = sld [smem:[#allocation0]]
  $region49: #{mot_l2_loss.1} parent=0
    _
  %s5 = ssub.s32 1, %s3
  %s6 = scalar_select 0, %s5, %s3
  loop: start=0, step=1, limit=4
  $region2: #{mot_l2_loss.1} parent=0 // loop_pre_header
    _
  $region3: #{mot_l2_loss.1} parent=0 // loop_header
    %s8 = sphi 0, %s12
    %p9 = scmp.ge.s32.totalorder %s8, 4
    %s15 = sphi 0, %s27
    %s16 = sphi 0, %s23
    %s17 = sphi 0, %s15
    %s18 = sphi 0, %s16
    %s19 = sphi 0, %s17
    %s20 = sphi 0, %s18
    %s38 = sphi 0, %s40
    %s41 = sphi 0, %s38
    %s42 = sphi 0, %s41
    %s58 = sphi 0, %s42
    %s72 = sphi 0, %s74
    %s75 = sphi 0, %s72
    %s76 = sphi 0, %s75
    %s92 = sphi 0, %s76
    %s98 = sphi 0, %s100
    %s101 = sphi 0, %s98
    %s102 = sphi 0, %s101
    %s118 = sphi 0, %s102
  $region4: #{mot_l2_loss.1} parent=0 // loop_header_branch
    %11 = sbr.rel (%p9) target = $region8
  $region5: #{mot_l2_loss.1} parent=0 // loop_body
    %s13 = ssub.s32 %s8, 1
    %s14 = ssub.s32 %s8, 2
    %s21 = sadd.s32 1, %s16
    %p22 = scmp.ge.s32.totalorder %s21, 2
    %s23 = scalar_select %p22, 0, %s21
    %s24 = sadd.s32 1, %s15
    %s25 = scalar_select %p22, %s24, %s15
    %p26 = scmp.ge.s32.totalorder %s25, 1
    %s27 = scalar_select %p26, 0, %s25
    %s28 = smul.u32 %s15, 2
    %s29 = sadd.s32 %s28, %s16
    %p30 = scmp.lt.s32.totalorder %s29, 1
    %s31 = scalar_select %p30, %s29, 1
    %s32 = smul.u32 %s27, 2
    %s33 = sadd.s32 %s32, %s23
    %p34 = scmp.lt.s32.totalorder %s33, 1
    %s35 = scalar_select %p34, %s33, 1
    %s36 = ssub.s32 %s31, %s35
    %p37 = scmp.eq.s32.totalorder %s36, 0
    %s39 = sadd.s32 %s38, 1
    %s40 = scalar_select %p37, %s38, %s39
    %p43 = pneg %p37
    %p44 = scmp.eq.s32.totalorder %s8, 1
    %p45 = por %p43, %p44
    %p46 = scmp.ne.s32.totalorder %s38, %s41
    %p47 = scmp.eq.s32.totalorder %s8, 0
    %p48 = por %p46, %p47
    %p49 = scmp.ne.s32.totalorder %s38, %s41
    %p50 = scmp.eq.s32.totalorder %s13, 1
    %p51 = por %p49, %p50
    %p52 = scmp.ne.s32.totalorder %s41, %s42
    %p53 = scmp.eq.s32.totalorder %s13, 0
    %p54 = por %p52, %p53
    %p55 = scmp.ne.s32.totalorder %s41, %s42
    %p56 = scmp.eq.s32.totalorder %s14, 1
    %p57 = por %p55, %p56
    %p59 = scmp.ne.s32.totalorder %s42, %s58
    %p60 = scmp.eq.s32.totalorder %s14, 0
    %p61 = por %p59, %p60
    %s62 = smul.u32 %s15, 2
    %s63 = sadd.s32 %s62, %s16
    %p64 = scmp.lt.s32.totalorder %s63, 1
    %s65 = scalar_select %p64, %s63, 1
    %s66 = smul.u32 %s27, 2
    %s67 = sadd.s32 %s66, %s23
    %p68 = scmp.lt.s32.totalorder %s67, 1
    %s69 = scalar_select %p68, %s67, 1
    %s70 = ssub.s32 %s65, %s69
    %p71 = scmp.eq.s32.totalorder %s70, 0
    %s73 = sadd.s32 %s72, 1
    %s74 = scalar_select %p71, %s72, %s73
    %p77 = pneg %p71
    %p78 = scmp.eq.s32.totalorder %s8, 1
    %p79 = por %p77, %p78
    %p80 = scmp.ne.s32.totalorder %s72, %s75
    %p81 = scmp.eq.s32.totalorder %s8, 0
    %p82 = por %p80, %p81
    %p83 = scmp.ne.s32.totalorder %s72, %s75
    %p84 = scmp.eq.s32.totalorder %s13, 1
    %p85 = por %p83, %p84
    %p86 = scmp.ne.s32.totalorder %s75, %s76
    %p87 = scmp.eq.s32.totalorder %s13, 0
    %p88 = por %p86, %p87
    %p89 = scmp.ne.s32.totalorder %s75, %s76
    %p90 = scmp.eq.s32.totalorder %s14, 1
    %p91 = por %p89, %p90
    %p93 = scmp.ne.s32.totalorder %s76, %s92
    %p94 = scmp.eq.s32.totalorder %s14, 0
    %p95 = por %p93, %p94
    %s96 = ssub.s32 %s15, %s27
    %p97 = scmp.eq.s32.totalorder %s96, 0
    %s99 = sadd.s32 %s98, 1
    %s100 = scalar_select %p97, %s98, %s99
    %p103 = pneg %p97
    %p104 = scmp.eq.s32.totalorder %s8, 1
    %p105 = por %p103, %p104
    %p106 = scmp.ne.s32.totalorder %s98, %s101
    %p107 = scmp.eq.s32.totalorder %s8, 0
    %p108 = por %p106, %p107
    %p109 = scmp.ne.s32.totalorder %s98, %s101
    %p110 = scmp.eq.s32.totalorder %s13, 1
    %p111 = por %p109, %p110
    %p112 = scmp.ne.s32.totalorder %s101, %s102
    %p113 = scmp.eq.s32.totalorder %s13, 0
    %p114 = por %p112, %p113
    %p115 = scmp.ne.s32.totalorder %s101, %s102
    %p116 = scmp.eq.s32.totalorder %s14, 1
    %p117 = por %p115, %p116
    %p119 = scmp.ne.s32.totalorder %s102, %s118
    %p120 = scmp.eq.s32.totalorder %s14, 0
    %p121 = por %p119, %p120
    %p122 = scmp.le.s32.totalorder 1, %s8
    %p123 = scmp.lt.s32.totalorder %s8, 3
    %p124 = pnand %p122, %p123
    %p125 = pneg %p124
    // Predicated region
    $region9: #{mot_l2_loss.1} parent=5 // pred_check
      _
    $region10: #{mot_l2_loss.1} parent=5 // pred_check_branch
      %127 = sbr.rel (%p124) target = $region12
    $region11: #{mot_l2_loss.1} parent=5 // pred_region
      %s128 = ssub.s32 %s8, 1
    $region12: #{mot_l2_loss.1} parent=5 // pred_fallthru
      _
    %p129 = scmp.lt.s32.totalorder %s8, 2
    // Predicated region
    $region13: #{mot_l2_loss.1} parent=5 // pred_check
      %p130 = pneg %p129
    $region14: #{mot_l2_loss.1} parent=5 // pred_check_branch
      %132 = sbr.rel (%p130) target = $region16
    $region15: #{mot_l2_loss.1} parent=5 // pred_region
      // Predicated region
      $region17: #{mot_l2_loss.1} parent=15 // pred_check
        %p133 = pneg %p48
      $region18: #{mot_l2_loss.1} parent=15 // pred_check_branch
        %135 = sbr.rel (%p133) target = $region20
      $region19: #{mot_l2_loss.1} parent=15 // pred_region
        %s136 = smul.u32 %s15, 2
        %s137 = sadd.s32 %s136, %s16
        %p138 = scmp.lt.s32.totalorder %s137, 1
        %s139 = scalar_select %p138, %s137, 1
        %s140 = smul.u32 15, %s139
        %s141 = ssub.s32 16, %s140
        %p142 = scmp.lt.s32.totalorder %s141, 15
        %s143 = scalar_select %p142, %s141, 15
        %s144 = smul.u32 128, %s143
        %p145 = scmp.lt.s32.totalorder %s140, 15
        %s146 = scalar_select %p145, %s140, 15
        %s147 = smul.addr %s146, 8
        %s148 = scalar_lea.vmem %s0, %s147
        %s149 = smul.u32 %s15, 2
        %s150 = sadd.s32 %s149, %s16
        %p151 = scmp.lt.s32.totalorder %s150, 1
        %s152 = scalar_select %p151, %s150, 1
        %s153 = smul.u32 15, %s152
        %s154 = ssub.s32 16, %s153
        %p155 = scmp.lt.s32.totalorder %s154, 15
        %s156 = scalar_select %p155, %s154, 15
        %s157 = smul.u32 128, %s156
      $region20: #{mot_l2_loss.1} parent=15 // pred_fallthru
        _
      // Predicated region
      $region21: #{mot_l2_loss.1} parent=15 // pred_check
        %p158 = pneg %p82
      $region22: #{mot_l2_loss.1} parent=15 // pred_check_branch
        %160 = sbr.rel (%p158) target = $region24
      $region23: #{mot_l2_loss.1} parent=15 // pred_region
        %s161 = smul.u32 %s15, 2
        %s162 = sadd.s32 %s161, %s16
        %p163 = scmp.lt.s32.totalorder %s162, 1
        %s164 = scalar_select %p163, %s162, 1
        %s165 = smul.u32 15, %s164
        %s166 = ssub.s32 16, %s165
        %p167 = scmp.lt.s32.totalorder %s166, 15
        %s168 = scalar_select %p167, %s166, 15
        %s169 = smul.u32 128, %s168
        %p170 = scmp.lt.s32.totalorder %s165, 15
        %s171 = scalar_select %p170, %s165, 15
        %s172 = smul.addr %s171, 8
        %s173 = scalar_lea.vmem %s1, %s172
        %s174 = smul.u32 %s15, 2
        %s175 = sadd.s32 %s174, %s16
        %p176 = scmp.lt.s32.totalorder %s175, 1
        %s177 = scalar_select %p176, %s175, 1
        %s178 = smul.u32 15, %s177
        %s179 = ssub.s32 16, %s178
        %p180 = scmp.lt.s32.totalorder %s179, 15
        %s181 = scalar_select %p180, %s179, 15
        %s182 = smul.u32 128, %s181
      $region24: #{mot_l2_loss.1} parent=15 // pred_fallthru
        _
    $region16: #{mot_l2_loss.1} parent=5 // pred_fallthru
      _
    %p183 = scmp.le.s32.totalorder 1, %s8
    %p184 = scmp.lt.s32.totalorder %s8, 3
    %p185 = pnand %p183, %p184
    %p186 = pneg %p185
    // Predicated region
    $region25: #{mot_l2_loss.1} parent=5 // pred_check
      _
    $region26: #{mot_l2_loss.1} parent=5 // pred_check_branch
      %188 = sbr.rel (%p185) target = $region28
    $region27: #{mot_l2_loss.1} parent=5 // pred_region
      %s189 = ssub.s32 %s8, 1
      %s190 = smul.u32 %s17, 2
      %s191 = sadd.s32 %s190, %s18
      %p192 = scmp.lt.s32.totalorder %s191, 1
      %s193 = scalar_select %p192, %s191, 1
      %s194 = smul.u32 15, %s193
      %s195 = ssub.s32 16, %s194
      %p196 = scmp.lt.s32.totalorder %s195, 15
      %s197 = scalar_select %p196, %s195, 15
      %s198 = smul.u32 128, %s197
      %p199 = scmp.lt.s32.totalorder %s194, 15
      %s200 = scalar_select %p199, %s194, 15
      %s201 = smul.addr %s200, 8
      %s202 = scalar_lea.vmem %s0, %s201
      %p203 = pneg %p54
      %p204 = pneg %p51
      %s205 = smul.u32 %s17, 2
      %s206 = sadd.s32 %s205, %s18
      %p207 = scmp.lt.s32.totalorder %s206, 1
      %s208 = scalar_select %p207, %s206, 1
      %s209 = smul.u32 15, %s208
      %s210 = ssub.s32 16, %s209
      %p211 = scmp.lt.s32.totalorder %s210, 15
      %s212 = scalar_select %p211, %s210, 15
      %s213 = smul.u32 128, %s212
      %p214 = scmp.lt.s32.totalorder %s209, 15
      %s215 = scalar_select %p214, %s209, 15
      %s216 = smul.addr %s215, 8
      %s217 = scalar_lea.vmem %s1, %s216
      %p218 = pneg %p88
      %p219 = pneg %p85
      %p220 = pneg %p114
      %p221 = pneg %p111
      %p222 = scmp.lt.s32.totalorder %s17, 0
      %s223 = scalar_select %p222, %s17, 0
      %s224 = smul.addr %s223, 8
      %s225 = scalar_lea.vmem %s2, %s224
      %s226 = smul.u32 %s17, 2
      %s227 = sadd.s32 %s226, %s18
      %p228 = scmp.lt.s32.totalorder %s227, 1
      %s229 = scalar_select %p228, %s227, 1
      %s230 = smul.u32 15, %s229
      %s231 = ssub.s32 16, %s230
      %p232 = scmp.lt.s32.totalorder %s231, 15
      %s233 = scalar_select %p232, %s231, 15
      %s234 = smul.u32 128, %s233
      %p235 = scmp.lt.s32.totalorder %s230, 15
      %s236 = scalar_select %p235, %s230, 15
      %s237 = smul.addr %s236, 8
      %s238 = scalar_lea.vmem %s0, %s237
      %s239 = smul.u32 %s17, 2
      %s240 = sadd.s32 %s239, %s18
      %p241 = scmp.lt.s32.totalorder %s240, 1
      %s242 = scalar_select %p241, %s240, 1
      %s243 = smul.u32 15, %s242
      %s244 = ssub.s32 16, %s243
      %p245 = scmp.lt.s32.totalorder %s244, 15
      %s246 = scalar_select %p245, %s244, 15
      %s247 = smul.u32 128, %s246
      %s248 = smul.u32 %s17, 2
      %s249 = sadd.s32 %s248, %s18
      %p250 = scmp.lt.s32.totalorder %s249, 1
      %s251 = scalar_select %p250, %s249, 1
      %s252 = smul.u32 15, %s251
      %s253 = ssub.s32 16, %s252
      %p254 = scmp.lt.s32.totalorder %s253, 15
      %s255 = scalar_select %p254, %s253, 15
      %s256 = smul.u32 128, %s255
      %p257 = scmp.lt.s32.totalorder %s252, 15
      %s258 = scalar_select %p257, %s252, 15
      %s259 = smul.addr %s258, 8
      %s260 = scalar_lea.vmem %s1, %s259
      %s261 = smul.u32 %s17, 2
      %s262 = sadd.s32 %s261, %s18
      %p263 = scmp.lt.s32.totalorder %s262, 1
      %s264 = scalar_select %p263, %s262, 1
      %s265 = smul.u32 15, %s264
      %s266 = ssub.s32 16, %s265
      %p267 = scmp.lt.s32.totalorder %s266, 15
      %s268 = scalar_select %p267, %s266, 15
      %s269 = smul.u32 128, %s268
      %p270 = scmp.lt.s32.totalorder %s17, 0
      %s271 = scalar_select %p270, %s17, 0
      %s272 = smul.addr %s271, 8
      %s273 = scalar_lea.vmem %s2, %s272
      %p274 = scmp.eq.s32.totalorder %s18, 0
      // Predicated region
      $region29: #{mot_l2_loss.1} parent=27 // pred_check
        %p275 = pneg %p274
      $region30: #{mot_l2_loss.1} parent=27 // pred_check_branch
        %277 = sbr.rel (%p275) target = $region32
      $region31: #{mot_l2_loss.1} parent=27 // pred_region
        %278 = vst [vmem:[#allocation2] sm:$0xff] 0.0
      $region32: #{mot_l2_loss.1} parent=27 // pred_fallthru
        _
      %v279 = vld [vmem:[%s238] sm:$0xff]
      %v280 = vld [vmem:[%s238 + $0x8] sm:$0xff]
      %v281 = vld [vmem:[%s238 + $0x10] sm:$0xff]
      %v282 = vld [vmem:[%s238 + $0x18] sm:$0xff]
      %v283 = vld [vmem:[%s238 + $0x20] sm:$0xff]
      %v284 = vld [vmem:[%s238 + $0x28] sm:$0xff]
      %v285 = vld [vmem:[%s238 + $0x30] sm:$0xff]
      %v286 = vld [vmem:[%s238 + $0x38] sm:$0xff]
      %v287 = vld [vmem:[%s238 + $0x40] sm:$0xff]
      %v288 = vld [vmem:[%s238 + $0x48] sm:$0xff]
      %v289 = vld [vmem:[%s238 + $0x50] sm:$0xff]
      %v290 = vld [vmem:[%s238 + $0x58] sm:$0xff]
      %v291 = vld [vmem:[%s238 + $0x60] sm:$0xff]
      %v292 = vld [vmem:[%s238 + $0x68] sm:$0xff]
      %v293 = vld [vmem:[%s238 + $0x70] sm:$0xff]
      %v294 = vld [vmem:[%s260] sm:$0xff]
      %v295 = vld [vmem:[%s260 + $0x8] sm:$0xff]
      %v296 = vld [vmem:[%s260 + $0x10] sm:$0xff]
      %v297 = vld [vmem:[%s260 + $0x18] sm:$0xff]
      %v298 = vld [vmem:[%s260 + $0x20] sm:$0xff]
      %v299 = vld [vmem:[%s260 + $0x28] sm:$0xff]
      %v300 = vld [vmem:[%s260 + $0x30] sm:$0xff]
      %v301 = vld [vmem:[%s260 + $0x38] sm:$0xff]
      %v302 = vld [vmem:[%s260 + $0x40] sm:$0xff]
      %v303 = vld [vmem:[%s260 + $0x48] sm:$0xff]
      %v304 = vld [vmem:[%s260 + $0x50] sm:$0xff]
      %v305 = vld [vmem:[%s260 + $0x58] sm:$0xff]
      %v306 = vld [vmem:[%s260 + $0x60] sm:$0xff]
      %v307 = vld [vmem:[%s260 + $0x68] sm:$0xff]
      %v308 = vld [vmem:[%s260 + $0x70] sm:$0xff]
      %v309 = vsub.f32 %v279, %v294
      %v310 = vsub.f32 %v280, %v295
      %v311 = vsub.f32 %v281, %v296
      %v312 = vsub.f32 %v282, %v297
      %v313 = vsub.f32 %v283, %v298
      %v314 = vsub.f32 %v284, %v299
      %v315 = vsub.f32 %v285, %v300
      %v316 = vsub.f32 %v286, %v301
      %v317 = vsub.f32 %v287, %v302
      %v318 = vsub.f32 %v288, %v303
      %v319 = vsub.f32 %v289, %v304
      %v320 = vsub.f32 %v290, %v305
      %v321 = vsub.f32 %v291, %v306
      %v322 = vsub.f32 %v292, %v307
      %v323 = vsub.f32 %v293, %v308
      %v324 = vmul.f32 %v309, %v309
      %v325 = vmul.f32 %v310, %v310
      %v326 = vmul.f32 %v311, %v311
      %v327 = vmul.f32 %v312, %v312
      %v328 = vmul.f32 %v313, %v313
      %v329 = vmul.f32 %v314, %v314
      %v330 = vmul.f32 %v315, %v315
      %v331 = vmul.f32 %v316, %v316
      %v332 = vmul.f32 %v317, %v317
      %v333 = vmul.f32 %v318, %v318
      %v334 = vmul.f32 %v319, %v319
      %v335 = vmul.f32 %v320, %v320
      %v336 = vmul.f32 %v321, %v321
      %v337 = vmul.f32 %v322, %v322
      %v338 = vmul.f32 %v323, %v323
      %s339 = smul.u32 %s17, 2
      %s340 = sadd.s32 %s339, %s18
      %s341 = smul.u32 %s340, 120
      %v342 = vlaneseq
      %v343 = vshrl.u32 %v342, 7
      %v344 = vadd.s32 %v343, 8
      %v345 = vadd.s32 %v343, 16
      %v346 = vadd.s32 %v343, 24
      %v347 = vadd.s32 %v343, 32
      %v348 = vadd.s32 %v343, 40
      %v349 = vadd.s32 %v343, 48
      %v350 = vadd.s32 %v343, 56
      %v351 = vadd.s32 %v343, 64
      %v352 = vadd.s32 %v343, 72
      %v353 = vadd.s32 %v343, 80
      %v354 = vadd.s32 %v343, 88
      %v355 = vadd.s32 %v343, 96
      %v356 = vadd.s32 %v343, 104
      %v357 = vadd.s32 %v343, 112
      %v358 = vstv %s341
      %v359 = vadd.s32 %v343, %v358
      %v360 = vadd.s32 %v344, %v358
      %v361 = vadd.s32 %v345, %v358
      %v362 = vadd.s32 %v346, %v358
      %v363 = vadd.s32 %v347, %v358
      %v364 = vadd.s32 %v348, %v358
      %v365 = vadd.s32 %v349, %v358
      %v366 = vadd.s32 %v350, %v358
      %v367 = vadd.s32 %v351, %v358
      %v368 = vadd.s32 %v352, %v358
      %v369 = vadd.s32 %v353, %v358
      %v370 = vadd.s32 %v354, %v358
      %v371 = vadd.s32 %v355, %v358
      %v372 = vadd.s32 %v356, %v358
      %v373 = vadd.s32 %v357, %v358
      %vm374 = vcmp.lt.s32.totalorder %v359, 121
      %vm375 = vcmp.lt.s32.totalorder %v360, 121
      %vm376 = vcmp.lt.s32.totalorder %v361, 121
      %vm377 = vcmp.lt.s32.totalorder %v362, 121
      %vm378 = vcmp.lt.s32.totalorder %v363, 121
      %vm379 = vcmp.lt.s32.totalorder %v364, 121
      %vm380 = vcmp.lt.s32.totalorder %v365, 121
      %vm381 = vcmp.lt.s32.totalorder %v366, 121
      %vm382 = vcmp.lt.s32.totalorder %v367, 121
      %vm383 = vcmp.lt.s32.totalorder %v368, 121
      %vm384 = vcmp.lt.s32.totalorder %v369, 121
      %vm385 = vcmp.lt.s32.totalorder %v370, 121
      %vm386 = vcmp.lt.s32.totalorder %v371, 121
      %vm387 = vcmp.lt.s32.totalorder %v372, 121
      %vm388 = vcmp.lt.s32.totalorder %v373, 121
      %v389 = vsel %vm374, 1, 0
      %v390 = vsel %vm375, 1, 0
      %v391 = vsel %vm376, 1, 0
      %v392 = vsel %vm377, 1, 0
      %v393 = vsel %vm378, 1, 0
      %v394 = vsel %vm379, 1, 0
      %v395 = vsel %vm380, 1, 0
      %v396 = vsel %vm381, 1, 0
      %v397 = vsel %vm382, 1, 0
      %v398 = vsel %vm383, 1, 0
      %v399 = vsel %vm384, 1, 0
      %v400 = vsel %vm385, 1, 0
      %v401 = vsel %vm386, 1, 0
      %v402 = vsel %vm387, 1, 0
      %v403 = vsel %vm388, 1, 0
      %vm404 = vcmp.eq.s32.totalorder %v389, 1
      %vm405 = vcmp.eq.s32.totalorder %v390, 1
      %vm406 = vcmp.eq.s32.totalorder %v391, 1
      %vm407 = vcmp.eq.s32.totalorder %v392, 1
      %vm408 = vcmp.eq.s32.totalorder %v393, 1
      %vm409 = vcmp.eq.s32.totalorder %v394, 1
      %vm410 = vcmp.eq.s32.totalorder %v395, 1
      %vm411 = vcmp.eq.s32.totalorder %v396, 1
      %vm412 = vcmp.eq.s32.totalorder %v397, 1
      %vm413 = vcmp.eq.s32.totalorder %v398, 1
      %vm414 = vcmp.eq.s32.totalorder %v399, 1
      %vm415 = vcmp.eq.s32.totalorder %v400, 1
      %vm416 = vcmp.eq.s32.totalorder %v401, 1
      %vm417 = vcmp.eq.s32.totalorder %v402, 1
      %vm418 = vcmp.eq.s32.totalorder %v403, 1
      %v419 = vsel %vm404, %v324, 0.0
      %v420 = vsel %vm405, %v325, 0.0
      %v421 = vsel %vm406, %v326, 0.0
      %v422 = vsel %vm407, %v327, 0.0
      %v423 = vsel %vm408, %v328, 0.0
      %v424 = vsel %vm409, %v329, 0.0
      %v425 = vsel %vm410, %v330, 0.0
      %v426 = vsel %vm411, %v331, 0.0
      %v427 = vsel %vm412, %v332, 0.0
      %v428 = vsel %vm413, %v333, 0.0
      %v429 = vsel %vm414, %v334, 0.0
      %v430 = vsel %vm415, %v335, 0.0
      %v431 = vsel %vm416, %v336, 0.0
      %v432 = vsel %vm417, %v337, 0.0
      %v433 = vsel %vm418, %v338, 0.0
      %v434 = vld [vmem:[#allocation2] sm:$0xff]
      %v435 = vadd.f32 %v419, %v420
      %v436 = vadd.f32 %v435, %v421
      %v437 = vadd.f32 %v436, %v422
      %v438 = vadd.f32 %v437, %v423
      %v439 = vadd.f32 %v438, %v424
      %v440 = vadd.f32 %v439, %v425
      %v441 = vadd.f32 %v440, %v426
      %v442 = vadd.f32 %v441, %v427
      %v443 = vadd.f32 %v442, %v428
      %v444 = vadd.f32 %v443, %v429
      %v445 = vadd.f32 %v444, %v430
      %v446 = vadd.f32 %v445, %v431
      %v447 = vadd.f32 %v446, %v432
      %v448 = vadd.f32 %v447, %v433
      %v449 = vadd.f32 %v434, %v448
      %450 = vst [vmem:[#allocation2] sm:$0xff] %v449
      %p451 = scmp.eq.s32.totalorder %s18, 1
      // Predicated region
      $region33: #{mot_l2_loss.1} parent=27 // pred_check
        %p452 = pneg %p451
      $region34: #{mot_l2_loss.1} parent=27 // pred_check_branch
        %454 = sbr.rel (%p452) target = $region36
      $region35: #{mot_l2_loss.1} parent=27 // pred_region
        %v455 = vld [vmem:[#allocation2] sm:$0xff]
        %456 = vst [vmem:[%s273] sm:$0xff] %v455
      $region36: #{mot_l2_loss.1} parent=27 // pred_fallthru
        _
      %p457 = scmp.lt.s32.totalorder %s17, 0
      %s458 = scalar_select %p457, %s17, 0
      %s459 = smul.addr %s458, 8
      %s460 = scalar_lea.vmem %s2, %s459
      // Predicated region
      $region37: #{mot_l2_loss.1} parent=27 // pred_check
        %p461 = pneg %p111
      $region38: #{mot_l2_loss.1} parent=27 // pred_check_branch
        %463 = sbr.rel (%p461) target = $region40
      $region39: #{mot_l2_loss.1} parent=27 // pred_region
        _
      $region40: #{mot_l2_loss.1} parent=27 // pred_fallthru
        _
      // Predicated region
      $region41: #{mot_l2_loss.1} parent=27 // pred_check
        %p464 = pneg %p111
      $region42: #{mot_l2_loss.1} parent=27 // pred_check_branch
        %466 = sbr.rel (%p464) target = $region44
      $region43: #{mot_l2_loss.1} parent=27 // pred_region
        %p467 = scmp.lt.s32.totalorder %s17, 0
        %s468 = scalar_select %p467, %s17, 0
        %s469 = smul.addr %s468, 8
        %s470 = scalar_lea.vmem %s2, %s469
      $region44: #{mot_l2_loss.1} parent=27 // pred_fallthru
        _
    $region28: #{mot_l2_loss.1} parent=5 // pred_fallthru
      _
    %p471 = scmp.le.s32.totalorder 2, %s8
    // Predicated region
    $region45: #{mot_l2_loss.1} parent=5 // pred_check
      %p472 = pneg %p471
    $region46: #{mot_l2_loss.1} parent=5 // pred_check_branch
      %474 = sbr.rel (%p472) target = $region48
    $region47: #{mot_l2_loss.1} parent=5 // pred_region
      %s475 = ssub.s32 %s8, 2
    $region48: #{mot_l2_loss.1} parent=5 // pred_fallthru
      _
  $region6: #{mot_l2_loss.1} parent=0 // loop_footer
    %s12 = sadd.s32 1, %s8
  $region7: #{mot_l2_loss.1} parent=0 // loop_footer_branch
    %7 = sbr.rel target = $region3
  $region8: #{mot_l2_loss.1} parent=0 // loop_exit
    _

</llo_original>
